<compile_context>
chip_gen: v7x
topology: tpu7x:2x2x1
jax: 0.10.0
libtpu: 0.0.40
codegen_flags: <defaults>
</compile_context>

<pallas_src>
import jax
import jax.numpy as jnp
from jax.experimental import pallas as pl
from jax.experimental.pallas import tpu as pltpu


_MIN_TILE_BYTES = 4 * 1024 * 1024   # don't shrink tiles below this for step count


def _vmem_budgets():
    """Returns (activation tile budget bytes, vmem_limit_bytes), per generation."""
    try:
        cap = pltpu.get_tpu_info().vmem_capacity_bytes
    except Exception:
        cap = None
    if cap is None:
        cap = 64 * 1024 * 1024                       # conservative (v7x-sized)
    if cap >= 96 * 1024 * 1024:                      # v5e / v6e: 128 MiB VMEM
        return 80 * 1024 * 1024, 100 * 1024 * 1024
    return 32 * 1024 * 1024, 48 * 1024 * 1024        # v7x: 64 MiB per TensorCore


# ---------------- single-pass kernel (whole (C, HW) slab resident) -----------

def _se_kernel(x_ref, w1_ref, b1_ref, w2_ref, b2_ref, o_ref):
    # x_ref: [Bt, C, HW]  (CHW kept exactly as in HBM; no wrapper relayout)
    xf = x_ref[...].astype(jnp.float32)
    pooled = jnp.mean(xf, axis=-1)                                   # [Bt, C]
    h = jnp.dot(pooled, w1_ref[...],
                preferred_element_type=jnp.float32) + b1_ref[...]    # [Bt, Cr]
    h = jnp.maximum(h, 0.0)
    s = jax.nn.sigmoid(jnp.dot(h, w2_ref[...],
                               preferred_element_type=jnp.float32) + b2_ref[...])
    o_ref[...] = (xf * s[:, :, None]).astype(o_ref.dtype)


# ---------------- two-pass fallback kernels (large activations) --------------

def _pool_kernel(x_ref, p_ref):
    # x_ref: [Bt, Cc, HW] -> p_ref: [Bt, Cc, 1]  (per-channel global mean)
    p_ref[...] = jnp.mean(x_ref[...].astype(jnp.float32), axis=-1, keepdims=True)


def _excite_kernel(p_ref, w1_ref, b1_ref, w2_ref, b2_ref, s_ref):
    # p_ref: [B, C] -> s_ref: [B, C]  (tiny; whole arrays resident, no grid)
    h = jnp.dot(p_ref[...], w1_ref[...],
                preferred_element_type=jnp.float32) + b1_ref[...]
    h = jnp.maximum(h, 0.0)
    s_ref[...] = jax.nn.sigmoid(
        jnp.dot(h, w2_ref[...], preferred_element_type=jnp.float32) + b2_ref[...])


def _scale_kernel(x_ref, s_ref, o_ref):
    # x_ref: [Bt, Cc, HW], s_ref: [Bt, Cc, 1]
    o_ref[...] = (x_ref[...].astype(jnp.float32) * s_ref[...]).astype(o_ref.dtype)


# ---------------- tiling heuristics ------------------------------------------

def _pick_batch_tile(B, slab_bytes, tile_budget):
    """Largest bt fitting 2in+2out double-buffered tiles; prefer >=4 grid steps
    (2 per TensorCore on v7x) only when the split tile stays >= _MIN_TILE_BYTES."""
    bt = min(B, max(1, tile_budget // (4 * slab_bytes)))
    if B >= 2:
        target_steps = 4 if B >= 4 else 2
        bt_split = -(-B // target_steps)            # cdiv
        if bt_split < bt and bt_split * slab_bytes >= _MIN_TILE_BYTES:
            bt = bt_split
    return bt


def _pick_two_pass_tiles(B, C, HW, itemsize, tile_budget):
    row_bytes = HW * itemsize                       # one channel row, one batch
    cc = (tile_budget // (4 * row_bytes)) // 8 * 8  # channel chunk, multiple of 8
    cc = max(8, min(cc, C))
    bt = max(1, tile_budget // (4 * cc * row_bytes))
    bt = min(bt, B)
    return bt, cc


# ---------------- public wrapper ----------------------------------------------

def se_block(x_nchw, w1, b1, w2, b2, *, tile_budget_bytes=None):
    """x_nchw: [B, C, H, W].  w1: [C, Cr], b1: [Cr], w2: [Cr, C], b2: [C].

    Math is carried out in f32; bf16 activations are supported (upcast after
    load, downcast on store) for a ~2x HBM-traffic reduction when desired.
    """
    B, C, H, W = x_nchw.shape
    Cr = w1.shape[1]
    HW = H * W
    dtype = x_nchw.dtype
    itemsize = jnp.dtype(dtype).itemsize

    tile_budget, vmem_limit = _vmem_budgets()
    if tile_budget_bytes is not None:
        tile_budget = tile_budget_bytes

    b1_2d = b1.reshape(1, Cr)
    b2_2d = b2.reshape(1, C)
    x = x_nchw.reshape(B, C, HW)          # contiguous reshape: free, no HBM pass

    w_bytes = (C * Cr + Cr * C + Cr + C) * 4
    slab_bytes = C * HW * itemsize
    # Two-pass only pays off if the single-batch slab blows the double-buffered
    # budget AND the channel axis can actually be split.
    two_pass = (4 * slab_bytes > tile_budget) and (C % 8 == 0) and (C > 8)

    if not two_pass:
        # TODO(synk): huge activations whose C is not a multiple of 8 can't be
        # chunked along channels; they fall through here with bt=1.
        bt = _pick_batch_tile(B, slab_bytes, tile_budget)
        grid = (pl.cdiv(B, bt),)
        out = pl.pallas_call(
            _se_kernel,
            out_shape=jax.ShapeDtypeStruct((B, C, HW), dtype),
            grid_spec=pltpu.PrefetchScalarGridSpec(
                num_scalar_prefetch=0,
                grid=grid,
                in_specs=[
                    pl.BlockSpec((bt, C, HW), lambda b: (b, 0, 0)),   # x
                    pl.BlockSpec((C, Cr), lambda b: (0, 0)),          # w1 resident
                    pl.BlockSpec((1, Cr), lambda b: (0, 0)),          # b1
                    pl.BlockSpec((Cr, C), lambda b: (0, 0)),          # w2 resident
                    pl.BlockSpec((1, C), lambda b: (0, 0)),           # b2
                ],
                out_specs=pl.BlockSpec((bt, C, HW), lambda b: (b, 0, 0)),
            ),
            compiler_params=pltpu.CompilerParams(
                dimension_semantics=("parallel",),
                vmem_limit_bytes=vmem_limit,
            ),
            cost_estimate=pl.CostEstimate(
                flops=2 * B * C * HW + 4 * B * C * Cr,
                transcendentals=B * C,
                bytes_accessed=2 * B * C * HW * itemsize + w_bytes,
            ),
        )(x, w1, b1_2d, w2, b2_2d)
        return out.reshape(B, C, H, W)

    # ---- Two-pass fallback: pool -> tiny excitation -> scale -----------------
    bt, cc = _pick_two_pass_tiles(B, C, HW, itemsize, tile_budget)
    grid = (pl.cdiv(B, bt), pl.cdiv(C, cc))

    pooled = pl.pallas_call(
        _pool_kernel,
        out_shape=jax.ShapeDtypeStruct((B, C, 1), jnp.float32),
        grid_spec=pltpu.PrefetchScalarGridSpec(
            num_scalar_prefetch=0,
            grid=grid,
            in_specs=[pl.BlockSpec((bt, cc, HW), lambda b, c: (b, c, 0))],
            out_specs=pl.BlockSpec((bt, cc, 1), lambda b, c: (b, c, 0)),
        ),
        compiler_params=pltpu.CompilerParams(
            dimension_semantics=("parallel", "parallel"),
            vmem_limit_bytes=vmem_limit,
        ),
        cost_estimate=pl.CostEstimate(
            flops=B * C * HW, transcendentals=0,
            bytes_accessed=B * C * HW * itemsize + B * C * 4,
        ),
    )(x)

    s = pl.pallas_call(
        _excite_kernel,
        out_shape=jax.ShapeDtypeStruct((B, C), jnp.float32),
        cost_estimate=pl.CostEstimate(
            flops=4 * B * C * Cr, transcendentals=B * C,
            bytes_accessed=B * C * 8 + w_bytes,
        ),
    )(pooled.reshape(B, C), w1, b1_2d, w2, b2_2d)

    out = pl.pallas_call(
        _scale_kernel,
        out_shape=jax.ShapeDtypeStruct((B, C, HW), dtype),
        grid_spec=pltpu.PrefetchScalarGridSpec(
            num_scalar_prefetch=0,
            grid=grid,
            in_specs=[pl.BlockSpec((bt, cc, HW), lambda b, c: (b, c, 0)),
                      pl.BlockSpec((bt, cc, 1), lambda b, c: (b, c, 0))],
            out_specs=pl.BlockSpec((bt, cc, HW), lambda b, c: (b, c, 0)),
        ),
        compiler_params=pltpu.CompilerParams(
            dimension_semantics=("parallel", "parallel"),
            vmem_limit_bytes=vmem_limit,
        ),
        cost_estimate=pl.CostEstimate(
            flops=B * C * HW, transcendentals=0,
            bytes_accessed=2 * B * C * HW * itemsize + B * C * 4,
        ),
    )(x, s.reshape(B, C, 1))
    return out.reshape(B, C, H, W)


def se_block_reference(x, w1, b1, w2, b2):
    pooled = jnp.mean(x.reshape(*x.shape[:-2], -1), axis=-1)
    h = jnp.maximum(pooled @ w1 + b1, 0.0)
    s = jax.nn.sigmoid(h @ w2 + b2)
    return x * s[:, :, None, None]


if __name__ == "__main__":
    def run_case(B, C, H, W, rr, key, tile_budget_bytes=None):
        Cr = C // rr
        kx, k1, k2, k3, k4 = jax.random.split(key, 5)
        x = jax.random.normal(kx, (B, C, H, W), dtype=jnp.float32)
        # nn.Linear stores [out, in]; we store transposed [in, out] so the
        # kernel does y = x @ W + b.
        bound1 = 1.0 / jnp.sqrt(C)
        bound2 = 1.0 / jnp.sqrt(Cr)
        w1 = jax.random.uniform(k1, (C, Cr), jnp.float32, -bound1, bound1)
        b1 = jax.random.uniform(k2, (Cr,), jnp.float32, -bound1, bound1)
        w2 = jax.random.uniform(k3, (Cr, C), jnp.float32, -bound2, bound2)
        b2 = jax.random.uniform(k4, (C,), jnp.float32, -bound2, bound2)

        out = jax.block_until_ready(
            se_block(x, w1, b1, w2, b2, tile_budget_bytes=tile_budget_bytes))
        ref = se_block_reference(x, w1, b1, w2, b2)
        assert out.shape == (B, C, H, W)
        assert jnp.allclose(out, ref, atol=1e-5, rtol=1e-5), \
            f"mismatch vs reference for shape {(B, C, H, W)}"

    key = jax.random.PRNGKey(0)
    k0, k1, k2, k3 = jax.random.split(key, 4)
    # HW = 256 (lane-dense), whole batch in one step.
    run_case(2, 4, 16, 16, 2, k0)
    # HW = 49 (not a multiple of 128): CHW layout kept, masked stores accepted.
    run_case(2, 128, 7, 7, 4, k1)
    # Forced tiny budget -> exercises the two-pass fallback with a partial
    # channel chunk (C=40, chunk=16).
    run_case(2, 40, 16, 16, 4, k2, tile_budget_bytes=64 * 1024)
    # Forced small budget with B=3 -> single-pass with cdiv grid and a masked
    # partial batch block.
    run_case(3, 8, 8, 8, 2, k3, tile_budget_bytes=16 * 1024)

    print("KERNEL_OK")
</pallas_src>

<mosaic_0001>
module attributes {stable_mosaic.version = 11 : i64} {
  func.func @_se_kernel(%arg0: i32, %arg1: memref<2x4x256xf32, #tpu.memory_space<vmem>>, %arg2: memref<4x2xf32, #tpu.memory_space<vmem>>, %arg3: memref<1x2xf32, #tpu.memory_space<vmem>>, %arg4: memref<2x4xf32, #tpu.memory_space<vmem>>, %arg5: memref<1x4xf32, #tpu.memory_space<vmem>>, %arg6: memref<2x4x256xf32, #tpu.memory_space<vmem>>) attributes {dimension_semantics = [#tpu.dimension_semantics<parallel>], iteration_bounds = array<i64: 1>, scalar_prefetch = 0 : i64, scratch_operands = 0 : i64, tpu.core_type = #tpu.core_type<tc>, window_params = [{transform_indices = @transform_0, window_bounds = array<i64: 2, 4, 256>}, {pipeline_mode = #tpu.pipeline_mode<synchronous>, transform_indices = @transform_1, window_bounds = array<i64: 4, 2>}, {pipeline_mode = #tpu.pipeline_mode<synchronous>, transform_indices = @transform_2, window_bounds = array<i64: 1, 2>}, {pipeline_mode = #tpu.pipeline_mode<synchronous>, transform_indices = @transform_3, window_bounds = array<i64: 2, 4>}, {pipeline_mode = #tpu.pipeline_mode<synchronous>, transform_indices = @transform_4, window_bounds = array<i64: 1, 4>}, {transform_indices = @transform_5, window_bounds = array<i64: 2, 4, 256>}]} {
    %c0 = arith.constant 0 : index
    %c0_0 = arith.constant 0 : index
    %c0_1 = arith.constant 0 : index
    %0 = vector.load %arg1[%c0, %c0_0, %c0_1] : memref<2x4x256xf32, #tpu.memory_space<vmem>>, vector<2x4x256xf32>
    %cst = arith.constant dense<0.000000e+00> : vector<2x4xf32>
    %1 = vector.multi_reduction <add>, %0, %cst [2] : vector<2x4x256xf32> to vector<2x4xf32>
    %cst_2 = arith.constant 2.560000e+02 : f32
    %2 = vector.broadcast %cst_2 : f32 to vector<2x4xf32>
    %3 = arith.divf %1, %2 : vector<2x4xf32>
    %c0_3 = arith.constant 0 : index
    %c0_4 = arith.constant 0 : index
    %4 = vector.load %arg2[%c0_3, %c0_4] : memref<4x2xf32, #tpu.memory_space<vmem>>, vector<4x2xf32>
    %cst_5 = arith.constant dense<0.000000e+00> : vector<2x2xf32>
    %5 = tpu.matmul %3, %4, %cst_5 {dimension_numbers = #tpu.dot_dimension_numbers<[1], [0], [0], [1], [0, 0, 1, 1], [], []>} : vector<2x4xf32>, vector<4x2xf32>, vector<2x2xf32> -> vector<2x2xf32>
    %c0_6 = arith.constant 0 : index
    %c0_7 = arith.constant 0 : index
    %6 = vector.load %arg3[%c0_6, %c0_7] : memref<1x2xf32, #tpu.memory_space<vmem>>, vector<1x2xf32>
    %7 = vector.broadcast %6 : vector<1x2xf32> to vector<2x2xf32>
    %8 = arith.addf %5, %7 : vector<2x2xf32>
    %cst_8 = arith.constant 0.000000e+00 : f32
    %9 = vector.broadcast %cst_8 : f32 to vector<2x2xf32>
    %10 = arith.maximumf %8, %9 : vector<2x2xf32>
    %c0_9 = arith.constant 0 : index
    %c0_10 = arith.constant 0 : index
    %11 = vector.load %arg4[%c0_9, %c0_10] : memref<2x4xf32, #tpu.memory_space<vmem>>, vector<2x4xf32>
    %cst_11 = arith.constant dense<0.000000e+00> : vector<2x4xf32>
    %12 = tpu.matmul %10, %11, %cst_11 {dimension_numbers = #tpu.dot_dimension_numbers<[1], [0], [0], [1], [0, 0, 1, 1], [], []>} : vector<2x2xf32>, vector<2x4xf32>, vector<2x4xf32> -> vector<2x4xf32>
    %c0_12 = arith.constant 0 : index
    %c0_13 = arith.constant 0 : index
    %13 = vector.load %arg5[%c0_12, %c0_13] : memref<1x4xf32, #tpu.memory_space<vmem>>, vector<1x4xf32>
    %14 = vector.broadcast %13 : vector<1x4xf32> to vector<2x4xf32>
    %15 = arith.addf %12, %14 : vector<2x4xf32>
    %16 = arith.negf %15 : vector<2x4xf32>
    %17 = math.exp %16 : vector<2x4xf32>
    %cst_14 = arith.constant 1.000000e+00 : f32
    %18 = vector.broadcast %cst_14 : f32 to vector<2x4xf32>
    %19 = arith.addf %18, %17 : vector<2x4xf32>
    %20 = arith.divf %18, %19 : vector<2x4xf32>
    %21 = vector.shape_cast %20 : vector<2x4xf32> to vector<2x4x1xf32>
    %22 = vector.broadcast %21 : vector<2x4x1xf32> to vector<2x4x256xf32>
    %23 = arith.mulf %0, %22 : vector<2x4x256xf32>
    %c0_15 = arith.constant 0 : index
    %c0_16 = arith.constant 0 : index
    %c0_17 = arith.constant 0 : index
    %24 = vector.load %arg6[%c0_15, %c0_16, %c0_17] : memref<2x4x256xf32, #tpu.memory_space<vmem>>, vector<2x4x256xf32>
    tpu.vector_store %arg6[%c0_15, %c0_16, %c0_17], %23 {strides = array<i32>} : memref<2x4x256xf32, #tpu.memory_space<vmem>>, vector<2x4x256xf32>,
    return
  }
  func.func @transform_0(%arg0: i32) -> (i32, i32, i32) {
    %c0_i32 = arith.constant 0 : i32
    %c0_i32_0 = arith.constant 0 : i32
    %c0_i32_1 = arith.constant 0 : i32
    return %arg0, %c0_i32, %c0_i32_0 : i32, i32, i32
  }
  func.func @transform_1(%arg0: i32) -> (i32, i32) {
    %c0_i32 = arith.constant 0 : i32
    %c0_i32_0 = arith.constant 0 : i32
    %c0_i32_1 = arith.constant 0 : i32
    return %c0_i32, %c0_i32_0 : i32, i32
  }
  func.func @transform_2(%arg0: i32) -> (i32, i32) {
    %c0_i32 = arith.constant 0 : i32
    %c0_i32_0 = arith.constant 0 : i32
    %c0_i32_1 = arith.constant 0 : i32
    return %c0_i32, %c0_i32_0 : i32, i32
  }
  func.func @transform_3(%arg0: i32) -> (i32, i32) {
    %c0_i32 = arith.constant 0 : i32
    %c0_i32_0 = arith.constant 0 : i32
    %c0_i32_1 = arith.constant 0 : i32
    return %c0_i32, %c0_i32_0 : i32, i32
  }
  func.func @transform_4(%arg0: i32) -> (i32, i32) {
    %c0_i32 = arith.constant 0 : i32
    %c0_i32_0 = arith.constant 0 : i32
    %c0_i32_1 = arith.constant 0 : i32
    return %c0_i32, %c0_i32_0 : i32, i32
  }
  func.func @transform_5(%arg0: i32) -> (i32, i32, i32) {
    %c0_i32 = arith.constant 0 : i32
    %c0_i32_0 = arith.constant 0 : i32
    %c0_i32_1 = arith.constant 0 : i32
    return %arg0, %c0_i32, %c0_i32_0 : i32, i32, i32
  }
}

</mosaic_0001>

<llo_original>
// kernel: tpu_custom_call.1
$region0: #{tpu_custom_call.1}
  #allocation0 [shape = 'u32[]', space=smem, size = 0x4, offset = 0x4, fixed_abs, tag = 'smem constant byte address 0x4 - core index']
  #allocation1 [shape = 'u32[144,128]{1,0:T(1,128)}', space=vmem, size = 0x12000, scoped, tag = 'internal scratch']
  %s0 = inlined_call_operand.hbm [shape: f32[2,4,256], index: 0, kind: input, shape index: {}]
  %s1 = inlined_call_operand.vmem [shape: f32[4,2], index: 1, kind: input, shape index: {}]
  %s2 = inlined_call_operand.vmem [shape: f32[1,2], index: 2, kind: input, shape index: {}]
  %s3 = inlined_call_operand.vmem [shape: f32[2,4], index: 3, kind: input, shape index: {}]
  %s4 = inlined_call_operand.vmem [shape: f32[1,4], index: 4, kind: input, shape index: {}]
  %s5 = inlined_call_operand.hbm [shape: f32[2,4,256], index: 5, kind: output, shape index: {}]
  %s6 = sld [smem:[#allocation0]]
  $region34: #{tpu_custom_call.1} parent=0
    _
  %s8 = ssub.s32 1, %s6
  %s9 = scalar_select 0, %s8, %s6
  $region1: #{tpu_custom_call.1} parent=0
    #allocation2 [shape = 'u8[8192]{0}', space=vmem, size = 0x2000, scoped, tag = 'input window, operand 0, single buffered']
    #allocation3 [shape = 's32[1]{0}', space=sflag, size = 0x4, scoped, tag = 'scoped memory for tpu_custom_call.1']
    #allocation4 [shape = 's32[1]{0}', space=sflag, size = 0x4, scoped, tag = 'scoped memory for tpu_custom_call.1']
    #allocation5 [shape = 'u8[8192]{0}', space=vmem, size = 0x2000, scoped, tag = 'output window, operand 0, single buffered']
    %10 = vsyncpa [#allocation3], 0
    %11 = vsyncpa [#allocation4], 0
    // Predicated region
    $region2: #{tpu_custom_call.1} parent=1 // pred_check
      _
    $region3: #{tpu_custom_call.1} parent=1 // pred_check_branch
      %13 = sbr.rel (0) target = $region5
    $region4: #{tpu_custom_call.1} parent=1 // pred_region
      %s15 = ssub.s32 256, 256
      %16 = vsyncadd [#allocation3], %s15
      %s17 = sshll.u32 [#allocation2], 4
      %s18 = int_to_ptr.vmem [resolvable:$true] %s17
      %23 = dma.hbm_to_vmem [thread:$0]  %s0, 256, %s18, [#allocation3], 128, 128, 8
    $region5: #{tpu_custom_call.1} parent=1 // pred_fallthru
      _
    // Predicated region
    $region6: #{tpu_custom_call.1} parent=1 // pred_check
      _
    $region7: #{tpu_custom_call.1} parent=1 // pred_check_branch
      %25 = sbr.rel (0) target = $region9
    $region8: #{tpu_custom_call.1} parent=1 // pred_region
      _
    $region9: #{tpu_custom_call.1} parent=1 // pred_fallthru
      _
    // Predicated region
    $region10: #{tpu_custom_call.1} parent=1 // pred_check
      _
    $region11: #{tpu_custom_call.1} parent=1 // pred_check_branch
      %27 = sbr.rel (0) target = $region13
    $region12: #{tpu_custom_call.1} parent=1 // pred_region
      _
    $region13: #{tpu_custom_call.1} parent=1 // pred_fallthru
      _
    // Predicated region
    $region14: #{tpu_custom_call.1} parent=1 // pred_check
      _
    $region15: #{tpu_custom_call.1} parent=1 // pred_check_branch
      %29 = sbr.rel (0) target = $region17
    $region16: #{tpu_custom_call.1} parent=1 // pred_region
      _
    $region17: #{tpu_custom_call.1} parent=1 // pred_fallthru
      _
    // Predicated region
    $region18: #{tpu_custom_call.1} parent=1 // pred_check
      _
    $region19: #{tpu_custom_call.1} parent=1 // pred_check_branch
      %31 = sbr.rel (0) target = $region21
    $region20: #{tpu_custom_call.1} parent=1 // pred_region
      _
    $region21: #{tpu_custom_call.1} parent=1 // pred_fallthru
      _
    // Predicated region
    $region22: #{tpu_custom_call.1} parent=1 // pred_check
      _
    $region23: #{tpu_custom_call.1} parent=1 // pred_check_branch
      %33 = sbr.rel (0) target = $region25
    $region24: #{tpu_custom_call.1} parent=1 // pred_region
      %34 = dma.done [#allocation3], 256
    $region25: #{tpu_custom_call.1} parent=1 // pred_fallthru
      _
    %v35 = vld [vmem:[#allocation2] sm:$0xff]
    %v36 = vld [vmem:[#allocation2 + $0x8] sm:$0xff]
    %v39 = vcombine.high %v35, %v35
    %v40 = vcombine.high %v36, %v36
    %vm43 = vcmask 1043456
    %v44 = vsel %vm43, %v35, 0.0
    %v45 = vsel %vm43, %v39, 0.0
    %v46 = vadd.f32 %v44, %v45
    %47 = vadd.xlane.f32.xlu0 %v46
    %v48 = vpop.xlane.xlu0 %47
    %v49 = vsel %vm43, %v36, 0.0
    %v50 = vsel %vm43, %v40, 0.0
    %v51 = vadd.f32 %v49, %v50
    %52 = vadd.xlane.f32.xlu0 %v51
    %v53 = vpop.xlane.xlu0 %52
    %v54 = vrcp.pop 256.0
    %v55 = vmul.f32 %v48, %v54
    %v56 = vmul.f32 %v53, %v54
    %v57 = vld [vmem:[%s1] sm:$0xf]
    %v58 = vld [vmem:[%s2] sm:$0x1]
    %v60 = vlaneseq
    %v61 = vshrl.u32 %v60, 7
    %v62 = vsub.s32 0, %v61
    %v63 = vrot.slane %v58, %v62
    %v67 = vlaneseq
    %v68 = vand.u32 %v67, 127
    %v69 = vlaneseq
    %v70 = vshrl.u32 %v69, 7
    %v71 = vsub.s32 %v68, %v70
    %v72 = vrot.slane %v55, %v71
    %v73 = vlaneseq
    %v74 = vshrl.u32 %v73, 7
    %v75 = vsub.s32 %v68, %v74
    %v76 = vrot.slane %v56, %v75
    %vm77 = vcmask 1041409
    %v78 = vsel %vm77, %v76, %v72
    %vm79 = vcmask 31744
    %v80 = vsel %vm79, %v78, 0
    %v83 = vsel %vm43, %v57, 0
    %85 = vmatprep.subr.mxu0 0.0
    %86 = vmatpush1.msra.mxu0 %v83
    %87 = vmatprep.subr.mxu0 0.0
    %88 = vmatpush1.msra.mxu0 0.0
    %89 = vmatprep.subr.mxu0 0.0
    %90 = vmatpush1.msra.mxu0 0.0
    %91 = vmatprep.subr.mxu0 0.0
    %92 = vmatpush1.msra.mxu0 0.0
    %93 = vmatprep.subr.mxu0 0.0
    %94 = vmatpush1.msra.mxu0 0.0
    %95 = vmatprep.subr.mxu0 0.0
    %96 = vmatpush1.msra.mxu0 0.0
    %97 = vmatprep.subr.mxu0 0.0
    %98 = vmatpush1.msra.mxu0 0.0
    %99 = vmatprep.subr.mxu0 0.0
    %100 = vmatpush1.msra.mxu0 0.0
    %101 = vmatprep.subr.mxu0 0.0
    %102 = vmatpush1.msra.mxu0 0.0
    %103 = vmatprep.subr.mxu0 0.0
    %104 = vmatpush1.msra.mxu0 0.0
    %105 = vmatprep.subr.mxu0 0.0
    %106 = vmatpush1.msra.mxu0 0.0
    %107 = vmatprep.subr.mxu0 0.0
    %108 = vmatpush1.msra.mxu0 0.0
    %109 = vmatprep.subr.mxu0 0.0
    %110 = vmatpush1.msra.mxu0 0.0
    %111 = vmatprep.subr.mxu0 0.0
    %112 = vmatpush1.msra.mxu0 0.0
    %113 = vmatprep.subr.mxu0 0.0
    %114 = vmatpush1.msra.mxu0 0.0
    %115 = vmatprep.subr.mxu0 0.0
    %116 = vmatpush1.msra.mxu0 0.0
    %117 = vmatprep.subr.mxu0 0.0
    %118 = vmatpush1.msra.mxu0 0.0
    %119 = vmatprep.subr.mxu0 0.0
    %120 = vmatpush1.msra.mxu0 0.0
    %121 = vmatprep.subr.mxu0 0.0
    %122 = vmatpush1.msra.mxu0 0.0
    %123 = vmatprep.subr.mxu0 0.0
    %124 = vmatpush1.msra.mxu0 0.0
    %125 = vmatprep.subr.mxu0 0.0
    %126 = vmatpush1.msra.mxu0 0.0
    %127 = vmatprep.subr.mxu0 0.0
    %128 = vmatpush1.msra.mxu0 0.0
    %129 = vmatprep.subr.mxu0 0.0
    %130 = vmatpush1.msra.mxu0 0.0
    %131 = vmatprep.subr.mxu0 0.0
    %132 = vmatpush1.msra.mxu0 0.0
    %133 = vmatprep.subr.mxu0 0.0
    %134 = vmatpush1.msra.mxu0 0.0
    %135 = vmatprep.subr.mxu0 0.0
    %136 = vmatpush1.msra.mxu0 0.0
    %137 = vmatprep.subr.mxu0 0.0
    %138 = vmatpush1.msra.mxu0 0.0
    %139 = vmatprep.subr.mxu0 0.0
    %140 = vmatpush1.msra.mxu0 0.0
    %141 = vmatprep.subr.mxu0 0.0
    %142 = vmatpush1.msra.mxu0 0.0
    %143 = vmatprep.subr.mxu0 0.0
    %144 = vmatpush1.msra.mxu0 0.0
    %145 = vmatprep.subr.mxu0 0.0
    %146 = vmatpush1.msra.mxu0 0.0
    %147 = vmatprep.subr.mxu0 0.0
    %148 = vmatpush1.msra.mxu0 0.0
    %149 = vmatprep.mubr.f32.mxu0 0.0
    %150 = vmatmul.mubr.f32.gmra.mrb[0].mxu0 %v80
    %v151 = vpop.f32.mrb[0].mxu0
    %v152 = vadd.f32 %v63, %v151
    %v153 = vpop.f32.mrb[0].mxu0
    %154 = vdwg.mxu0
    %v155 = vmax.f32 %v152, 0.0
    %v156 = vld [vmem:[%s3] sm:$0x3]
    %v157 = vld [vmem:[%s4] sm:$0x1]
    %v159 = vlaneseq
    %v160 = vshrl.u32 %v159, 7
    %v161 = vsub.s32 0, %v160
    %v162 = vrot.slane %v157, %v161
    %vm164 = vcmask 15360
    %v166 = vsel %vm164, %v155, 0
    %vm168 = vcmask 1041408
    %v170 = vsel %vm168, %v156, 0
    %172 = vmatprep.subr.mxu0 0.0
    %173 = vmatpush1.msra.mxu0 %v170
    %174 = vmatprep.subr.mxu0 0.0
    %175 = vmatpush1.msra.mxu0 0.0
    %176 = vmatprep.subr.mxu0 0.0
    %177 = vmatpush1.msra.mxu0 0.0
    %178 = vmatprep.subr.mxu0 0.0
    %179 = vmatpush1.msra.mxu0 0.0
    %180 = vmatprep.subr.mxu0 0.0
    %181 = vmatpush1.msra.mxu0 0.0
    %182 = vmatprep.subr.mxu0 0.0
    %183 = vmatpush1.msra.mxu0 0.0
    %184 = vmatprep.subr.mxu0 0.0
    %185 = vmatpush1.msra.mxu0 0.0
    %186 = vmatprep.subr.mxu0 0.0
    %187 = vmatpush1.msra.mxu0 0.0
    %188 = vmatprep.subr.mxu0 0.0
    %189 = vmatpush1.msra.mxu0 0.0
    %190 = vmatprep.subr.mxu0 0.0
    %191 = vmatpush1.msra.mxu0 0.0
    %192 = vmatprep.subr.mxu0 0.0
    %193 = vmatpush1.msra.mxu0 0.0
    %194 = vmatprep.subr.mxu0 0.0
    %195 = vmatpush1.msra.mxu0 0.0
    %196 = vmatprep.subr.mxu0 0.0
    %197 = vmatpush1.msra.mxu0 0.0
    %198 = vmatprep.subr.mxu0 0.0
    %199 = vmatpush1.msra.mxu0 0.0
    %200 = vmatprep.subr.mxu0 0.0
    %201 = vmatpush1.msra.mxu0 0.0
    %202 = vmatprep.subr.mxu0 0.0
    %203 = vmatpush1.msra.mxu0 0.0
    %204 = vmatprep.subr.mxu0 0.0
    %205 = vmatpush1.msra.mxu0 0.0
    %206 = vmatprep.subr.mxu0 0.0
    %207 = vmatpush1.msra.mxu0 0.0
    %208 = vmatprep.subr.mxu0 0.0
    %209 = vmatpush1.msra.mxu0 0.0
    %210 = vmatprep.subr.mxu0 0.0
    %211 = vmatpush1.msra.mxu0 0.0
    %212 = vmatprep.subr.mxu0 0.0
    %213 = vmatpush1.msra.mxu0 0.0
    %214 = vmatprep.subr.mxu0 0.0
    %215 = vmatpush1.msra.mxu0 0.0
    %216 = vmatprep.subr.mxu0 0.0
    %217 = vmatpush1.msra.mxu0 0.0
    %218 = vmatprep.subr.mxu0 0.0
    %219 = vmatpush1.msra.mxu0 0.0
    %220 = vmatprep.subr.mxu0 0.0
    %221 = vmatpush1.msra.mxu0 0.0
    %222 = vmatprep.subr.mxu0 0.0
    %223 = vmatpush1.msra.mxu0 0.0
    %224 = vmatprep.subr.mxu0 0.0
    %225 = vmatpush1.msra.mxu0 0.0
    %226 = vmatprep.subr.mxu0 0.0
    %227 = vmatpush1.msra.mxu0 0.0
    %228 = vmatprep.subr.mxu0 0.0
    %229 = vmatpush1.msra.mxu0 0.0
    %230 = vmatprep.subr.mxu0 0.0
    %231 = vmatpush1.msra.mxu0 0.0
    %232 = vmatprep.subr.mxu0 0.0
    %233 = vmatpush1.msra.mxu0 0.0
    %234 = vmatprep.subr.mxu0 0.0
    %235 = vmatpush1.msra.mxu0 0.0
    %236 = vmatprep.mubr.f32.mxu0 0.0
    %237 = vmatmul.mubr.f32.gmra.mrb[0].mxu0 %v166
    %v238 = vpop.f32.mrb[0].mxu0
    %v239 = vadd.f32 %v162, %v238
    %v240 = vpop.f32.mrb[0].mxu0
    %241 = vdwg.mxu0
    %v242 = vxor.u32 %v239, 2147483648
    %v243 = vmul.f32 %v242, 1.442695
    %v244 = vpow.pop %v243
    %v245 = vadd.f32 %v244, 1.0
    %v246 = vrcp.pop %v245
    %v247 = vmul.f32 1.0, %v246
    %v248 = vlaneseq
    %v249 = vshrl.u32 %v248, 7
    %v250 = vsub.s32 0, %v249
    %v251 = vrot.slane %v247, %v250
    %253 = vbcast.lane.b32.xlu0 %v251, 256
    %v254 = vpop.permute.xlu0 %253
    %v255 = vlaneseq
    %v256 = vshrl.u32 %v255, 7
    %v257 = vsub.s32 1, %v256
    %v258 = vrot.slane %v247, %v257
    %260 = vbcast.lane.b32.xlu0 %v258, 256
    %v261 = vpop.permute.xlu0 %260
    %v265 = vunpack.c.l.s4 839922192
    %v266 = vunpack.c.0.s8 %v265
    %v267 = vlaneseq
    %v268 = vshrl.u32 %v267, 7
    %v269 = vsub.s32 %v266, %v268
    %v270 = vrot.slane %v254, %v269
    %v272 = vunpack.c.l.s4 839922192
    %v273 = vunpack.c.0.s8 %v272
    %v274 = vlaneseq
    %v275 = vshrl.u32 %v274, 7
    %v276 = vsub.s32 %v273, %v275
    %v277 = vrot.slane %v261, %v276
    %v280 = vmul.f32 %v35, %v270
    %v281 = vmul.f32 %v36, %v277
    %282 = vst [vmem:[#allocation5] sm:$0xff] %v280
    %283 = vst [vmem:[#allocation5 + $0x8] sm:$0xff] %v281
    // Predicated region
    $region26: #{tpu_custom_call.1} parent=1 // pred_check
      _
    $region27: #{tpu_custom_call.1} parent=1 // pred_check_branch
      %285 = sbr.rel (0) target = $region29
    $region28: #{tpu_custom_call.1} parent=1 // pred_region
      %s287 = ssub.s32 256, 256
      %288 = vsyncadd [#allocation4], %s287
      %s289 = sshll.u32 [#allocation5], 4
      %s290 = int_to_ptr.vmem [resolvable:$true] %s289
      %295 = dma.vmem_to_hbm [thread:$0]  %s290, 256, %s5, [#allocation4], 128, 128, 8
    $region29: #{tpu_custom_call.1} parent=1 // pred_fallthru
      _
    // Predicated region
    $region30: #{tpu_custom_call.1} parent=1 // pred_check
      _
    $region31: #{tpu_custom_call.1} parent=1 // pred_check_branch
      %297 = sbr.rel (0) target = $region33
    $region32: #{tpu_custom_call.1} parent=1 // pred_region
      %298 = dma.done [#allocation4], 256
    $region33: #{tpu_custom_call.1} parent=1 // pred_fallthru
      _
    %299 = vsyncpa [#allocation3], 1
    %300 = vsyncpa [#allocation4], 1

</llo_original>
